<compile_context>
chip_gen: v6e
topology: v6e:2x2x1
jax: 0.10.0
libtpu: 0.0.40
codegen_flags: <defaults>
</compile_context>

<pallas_src>
import jax
import jax.numpy as jnp
from jax.experimental import pallas as pl
from jax.experimental.pallas import tpu as pltpu


def _round_up(x, m):
    return ((x + m - 1) // m) * m


def _divisor_tiles(n_pad):
    """All multiples of 128 that evenly divide n_pad (ascending)."""
    units = n_pad // 128
    return sorted(d * 128 for d in range(1, units + 1) if units % d == 0)


def _vmem_budget_bytes():
    """Per-generation usable VMEM budget (~75% of physical capacity)."""
    cap = 64 * 2 ** 20                     # conservative fallback (v7x per-TC)
    try:
        info = pltpu.get_tpu_info()
        cap = int(getattr(info, "vmem_capacity_bytes", cap) or cap)
    except Exception:
        pass
    return (cap * 3) // 4


# ----------------------------------------------------------------------------
# Fused fast path: whole forward in one kernel, everything VMEM-resident
# ----------------------------------------------------------------------------
def _fused_kernel(a_ref, x_ref, w1_ref, b1_ref, w2_ref, b2_ref,
                  p_ref, wl_ref, bl_ref, o_ref):
    # GCNConv 1: relu(A @ (X @ W1) + b1)
    xw1 = jnp.dot(x_ref[...], w1_ref[...], preferred_element_type=jnp.float32)
    h1 = jnp.maximum(
        jnp.dot(a_ref[...], xw1.astype(jnp.bfloat16),
                preferred_element_type=jnp.float32) + b1_ref[...], 0.0)
    # GCNConv 2: A @ (H1 @ W2) + b2
    hw2 = jnp.dot(h1.astype(jnp.bfloat16), w2_ref[...],
                  preferred_element_type=jnp.float32)
    h2 = jnp.dot(a_ref[...], hw2.astype(jnp.bfloat16),
                 preferred_element_type=jnp.float32) + b2_ref[...]
    # global_mean_pool + dropout(p=0.5, eval -> identity) + Linear
    # TODO(synk): training-mode dropout would mask `pooled` using
    #             pltpu.prng_random_bits here.
    pooled = jnp.dot(p_ref[...], h2.astype(jnp.bfloat16),
                     preferred_element_type=jnp.float32)
    o_ref[...] = jnp.dot(pooled, wl_ref[...],
                         preferred_element_type=jnp.float32) + bl_ref[...]


def _fused_forward(a, x, w1, b1, w2, b2, p, wl_t, bl, *, vmem_limit_bytes):
    gp = p.shape[0]
    lp = wl_t.shape[1]
    return pl.pallas_call(
        _fused_kernel,
        out_shape=jax.ShapeDtypeStruct((gp, lp), jnp.float32),
        compiler_params=pltpu.CompilerParams(
            vmem_limit_bytes=vmem_limit_bytes),
    )(a, x, w1, b1, w2, b2, p, wl_t, bl)


def _fused_vmem_estimate(n_pad, fp, hp, lp, gp):
    inputs = (n_pad * n_pad * 2 + n_pad * fp * 2 + gp * n_pad * 2
              + fp * hp * 2 + hp * hp * 2 + hp * lp * 4
              + 2 * hp * 4 + lp * 4)
    inter = 6 * n_pad * hp * 4           # f32 intermediates + compiler scratch
    out = gp * lp * 4
    return 2 * inputs + inter + out       # 2x: possible double-buffering


# ----------------------------------------------------------------------------
# Tiled path kernel 1: row-tiled feature transform  Z = X @ W
# ----------------------------------------------------------------------------
def _xform_kernel(x_ref, w_ref, o_ref):
    o_ref[...] = jnp.dot(x_ref[...], w_ref[...],
                         preferred_element_type=jnp.float32).astype(o_ref.dtype)


def _feature_transform(x, w, *, tile_m):
    n, f = x.shape
    h = w.shape[1]
    return pl.pallas_call(
        _xform_kernel,
        out_shape=jax.ShapeDtypeStruct((n, h), jnp.bfloat16),
        grid_spec=pltpu.PrefetchScalarGridSpec(
            num_scalar_prefetch=0,
            grid=(n // tile_m,),
            in_specs=[
                pl.BlockSpec((tile_m, f), lambda i: (i, 0)),
                pl.BlockSpec((f, h), lambda i: (0, 0)),
            ],
            out_specs=pl.BlockSpec((tile_m, h), lambda i: (i, 0)),
        ),
        compiler_params=pltpu.CompilerParams(
            dimension_semantics=("parallel",)),
    )(x, w)


# ----------------------------------------------------------------------------
# Tiled path kernel 2: GCN aggregation  out = [relu](A @ Z + b)
#   A tiled over (rows, contraction); Z either fully VMEM-resident (sliced
#   with pl.ds per contraction step) or streamed as a (tile_k, hp) stripe.
# ----------------------------------------------------------------------------
def _make_agg_kernel(apply_relu, resident_z, tile_k):
    def kernel(a_ref, z_ref, b_ref, o_ref, acc_ref):
        k = pl.program_id(1)

        @pl.when(k == 0)
        def _():
            acc_ref[...] = jnp.zeros_like(acc_ref)

        if resident_z:
            start = pl.multiple_of(k * tile_k, tile_k)
            z = z_ref[pl.ds(start, tile_k), :]
        else:
            z = z_ref[...]
        acc_ref[...] += jnp.dot(a_ref[...], z,
                                preferred_element_type=jnp.float32)

        @pl.when(k == pl.num_programs(1) - 1)
        def _():
            r = acc_ref[...] + b_ref[...]
            if apply_relu:
                r = jnp.maximum(r, 0.0)
            o_ref[...] = r.astype(o_ref.dtype)

    return kernel


def _gcn_aggregate(a, z, b, *, apply_relu, tile_m, tile_k, resident_z,
                   vmem_limit_bytes):
    n = a.shape[0]
    h = z.shape[1]
    n_row_tiles = n // tile_m
    z_bytes = (n * h * 2) if resident_z else (n_row_tiles * n * h * 2)
    cost = pl.CostEstimate(
        flops=2 * n * n * h,
        transcendentals=0,
        bytes_accessed=n * n * 2 + z_bytes + n * h * 2 + h * 4,
    )
    if resident_z:
        z_spec = pl.BlockSpec((n, h), lambda i, k: (0, 0))       # DMA'd once
    else:
        z_spec = pl.BlockSpec((tile_k, h), lambda i, k: (k, 0))   # per-step stripe
    return pl.pallas_call(
        _make_agg_kernel(apply_relu, resident_z, tile_k),
        out_shape=jax.ShapeDtypeStruct((n, h), jnp.bfloat16),
        grid_spec=pltpu.PrefetchScalarGridSpec(
            num_scalar_prefetch=0,
            grid=(n // tile_m, n // tile_k),
            in_specs=[
                pl.BlockSpec((tile_m, tile_k), lambda i, k: (i, k)),  # A tile
                z_spec,
                pl.BlockSpec((1, h), lambda i, k: (0, 0)),            # bias
            ],
            out_specs=pl.BlockSpec((tile_m, h), lambda i, k: (i, 0)),
            scratch_shapes=[pltpu.VMEM((tile_m, h), jnp.float32)],
        ),
        compiler_params=pltpu.CompilerParams(
            dimension_semantics=("parallel", "arbitrary"),
            vmem_limit_bytes=vmem_limit_bytes),
        cost_estimate=cost,
    )(a, z, b)


def _agg_vmem_bytes(tile_m, tile_k, n_pad, hp, resident_z):
    a_tile = 2 * tile_m * tile_k * 2                     # double-buffered bf16
    z = 2 * n_pad * hp * 2 if resident_z else 2 * tile_k * hp * 2
    out = 2 * tile_m * hp * 2
    acc = tile_m * hp * 4
    bias = 2 * hp * 4
    return a_tile + z + out + acc + bias


# ----------------------------------------------------------------------------
# Tiled path kernel 3: mean pool + final Linear   out = (P @ H2) @ Wl^T + bl
# ----------------------------------------------------------------------------
def _pool_lin_kernel(p_ref, h_ref, wl_ref, bl_ref, o_ref, acc_ref):
    @pl.when(pl.program_id(0) == 0)
    def _():
        acc_ref[...] = jnp.zeros_like(acc_ref)

    acc_ref[...] += jnp.dot(p_ref[...], h_ref[...],
                            preferred_element_type=jnp.float32)

    @pl.when(pl.program_id(0) == pl.num_programs(0) - 1)
    def _():
        # dropout(p=0.5): eval mode -> identity
        # TODO(synk): training-mode dropout would mask acc_ref with
        #             pltpu.prng_random_bits here.
        out = jnp.dot(acc_ref[...], wl_ref[...],
                      preferred_element_type=jnp.float32) + bl_ref[...]
        o_ref[...] = out.astype(o_ref.dtype)


def _pool_and_linear(p, h2, wl_t, bl, *, tile_k, vmem_limit_bytes):
    g, n = p.shape
    hp = h2.shape[1]
    lp = wl_t.shape[1]
    return pl.pallas_call(
        _pool_lin_kernel,
        out_shape=jax.ShapeDtypeStruct((g, lp), jnp.float32),
        grid_spec=pltpu.PrefetchScalarGridSpec(
            num_scalar_prefetch=0,
            grid=(n // tile_k,),
            in_specs=[
                pl.BlockSpec((g, tile_k), lambda k: (0, k)),
                pl.BlockSpec((tile_k, hp), lambda k: (k, 0)),
                pl.BlockSpec((hp, lp), lambda k: (0, 0)),
                pl.BlockSpec((1, lp), lambda k: (0, 0)),
            ],
            out_specs=pl.BlockSpec((g, lp), lambda k: (0, 0)),
            scratch_shapes=[pltpu.VMEM((g, hp), jnp.float32)],
        ),
        compiler_params=pltpu.CompilerParams(
            dimension_semantics=("arbitrary",),
            vmem_limit_bytes=vmem_limit_bytes),
    )(p, h2, wl_t, bl)


# ----------------------------------------------------------------------------
# Forward wrapper: padding / casting / path & tile selection
# ----------------------------------------------------------------------------
def semantic_aware_gnn_forward(a_pad, x, w1, b1, w2, b2, pool_mat, wl, bl,
                               *, force_tiled=False,
                               max_tile_m=1024, max_tile_k=2048):
    """a_pad: (n_pad, n_pad) bf16 normalized adjacency from
    gcn_norm_dense_padded, with n_pad = round_up(num_nodes, 128)."""
    n, f = x.shape
    n_pad = a_pad.shape[0]
    assert n_pad % 128 == 0 and n_pad >= n
    h = w1.shape[1]
    g = pool_mat.shape[0]
    l = wl.shape[0]

    fp = _round_up(f, 128)
    hp = _round_up(h, 128)     # keep at 128: aggregation is HBM-bound, not MXU
    lp = _round_up(l, 128)
    gp = _round_up(g, 8)

    a_pad = a_pad.astype(jnp.bfloat16)     # no-op when already bf16
    x_p = jnp.zeros((n_pad, fp), jnp.bfloat16).at[:n, :f].set(
        x.astype(jnp.bfloat16))
    w1_p = jnp.zeros((fp, hp), jnp.bfloat16).at[:f, :h].set(
        w1.astype(jnp.bfloat16))
    w2_p = jnp.zeros((hp, hp), jnp.bfloat16).at[:h, :h].set(
        w2.astype(jnp.bfloat16))
    b1_p = jnp.zeros((1, hp), jnp.float32).at[0, :h].set(b1)
    b2_p = jnp.zeros((1, hp), jnp.float32).at[0, :h].set(b2)
    p_p = jnp.zeros((gp, n_pad), jnp.bfloat16).at[:g, :n].set(
        pool_mat.astype(jnp.bfloat16))
    wl_t = jnp.zeros((hp, lp), jnp.float32).at[:h, :l].set(wl.T)  # pre-transposed
    bl_p = jnp.zeros((1, lp), jnp.float32).at[0, :l].set(bl)

    budget = _vmem_budget_bytes()

    # ---- fused single-kernel fast path --------------------------------------
    if (not force_tiled
            and _fused_vmem_estimate(n_pad, fp, hp, lp, gp) <= budget):
        out_p = _fused_forward(a_pad, x_p, w1_p, b1_p, w2_p, b2_p,
                               p_p, wl_t, bl_p, vmem_limit_bytes=budget)
        return out_p[:g, :l]

    # ---- tiled path ----------------------------------------------------------
    resident_z = (2 * n_pad * hp * 2) <= budget // 3
    tiles = _divisor_tiles(n_pad)
    # rows: prefer >= 2 row tiles so "parallel" shards across both v7x cores
    tm_opts = ([t for t in tiles if t <= max_tile_m and n_pad // t >= 2]
               or [t for t in tiles if t <= max_tile_m]
               or [tiles[0]])
    tile_m = max(tm_opts)
    # contraction: largest divisor tile that fits the VMEM budget
    tile_k = 128
    for cand in tiles:
        if cand <= max_tile_k and _agg_vmem_bytes(
                tile_m, cand, n_pad, hp, resident_z) <= budget:
            tile_k = max(tile_k, cand)

    # GCNConv 1: relu(A @ (X @ W1) + b1)
    xw1 = _feature_transform(x_p, w1_p, tile_m=tile_m)
    h1 = _gcn_aggregate(a_pad, xw1, b1_p, apply_relu=True,
                        tile_m=tile_m, tile_k=tile_k, resident_z=resident_z,
                        vmem_limit_bytes=budget)
    # GCNConv 2: A @ (H1 @ W2) + b2
    hw2 = _feature_transform(h1, w2_p, tile_m=tile_m)
    h2 = _gcn_aggregate(a_pad, hw2, b2_p, apply_relu=False,
                        tile_m=tile_m, tile_k=tile_k, resident_z=resident_z,
                        vmem_limit_bytes=budget)
    # global_mean_pool + dropout(eval=identity) + Linear
    out_p = _pool_and_linear(p_p, h2, wl_t, bl_p,
                             tile_k=tile_k, vmem_limit_bytes=budget)
    return out_p[:g, :l]


# ----------------------------------------------------------------------------
# Plain-JAX glue: padded bf16 GCN normalization and mean-pool matrix
# ----------------------------------------------------------------------------
def gcn_norm_dense_padded(edge_index, num_nodes, n_pad, out_dtype=jnp.bfloat16):
    """Symmetrically-normalized dense adjacency with self-loops (GCNConv),
    built directly as a zero-padded (n_pad, n_pad) buffer in out_dtype.
    Degrees are computed on f32 vectors.  Build once per (static) graph and
    reuse across forward calls (keeps the pad/cast out of the hot path)."""
    src, dst = edge_index[0], edge_index[1]
    # in-degree + 1 self-loop, on vectors (edge_index assumed self-loop free)
    deg = jnp.zeros((num_nodes,), jnp.float32).at[dst].add(1.0) + 1.0
    dinv = jnp.where(deg > 0, jax.lax.rsqrt(deg), 0.0)
    a = jnp.zeros((n_pad, n_pad), out_dtype)
    a = a.at[dst, src].set((dinv[dst] * dinv[src]).astype(out_dtype))
    idx = jnp.arange(num_nodes)
    a = a.at[idx, idx].set((dinv * dinv).astype(out_dtype))
    return a


def mean_pool_matrix(batch, num_graphs):
    onehot = (batch[None, :] == jnp.arange(num_graphs)[:, None]).astype(jnp.float32)
    counts = onehot.sum(axis=1, keepdims=True)
    return onehot / jnp.maximum(counts, 1.0)


# ----------------------------------------------------------------------------
if __name__ == "__main__":
    N_FEAT = 8     # num_node_features
    HIDDEN = 32    # hidden_channels
    LENGTH = 8     # output length

    def build_ring_edges(n_graphs, nodes_per_graph):
        src_list, dst_list = [], []
        for gi in range(n_graphs):
            base = gi * nodes_per_graph
            for i in range(nodes_per_graph):
                a, b = base + i, base + (i + 1) % nodes_per_graph
                src_list += [a, b]
                dst_list += [b, a]
        return jnp.array([src_list, dst_list], dtype=jnp.int32)

    def run_case(n_graphs, nodes_per_graph, *, force_tiled, **tile_kw):
        n_nodes = n_graphs * nodes_per_graph
        key = jax.random.PRNGKey(0)
        k = jax.random.split(key, 8)

        x = jax.random.normal(k[0], (n_nodes, N_FEAT), jnp.float32)
        edge_index = build_ring_edges(n_graphs, nodes_per_graph)
        batch = jnp.repeat(jnp.arange(n_graphs, dtype=jnp.int32),
                           nodes_per_graph)

        w1 = jax.random.normal(k[1], (N_FEAT, HIDDEN), jnp.float32) * 0.1
        b1 = jnp.zeros((HIDDEN,), jnp.float32)
        w2 = jax.random.normal(k[2], (HIDDEN, HIDDEN), jnp.float32) * 0.1
        b2 = jnp.zeros((HIDDEN,), jnp.float32)
        wl = jax.random.normal(k[3], (LENGTH, HIDDEN), jnp.float32) * 0.1
        bl = jax.random.normal(k[4], (LENGTH,), jnp.float32) * 0.1

        n_pad = _round_up(n_nodes, 128)
        a_pad = gcn_norm_dense_padded(edge_index, n_nodes, n_pad, jnp.bfloat16)
        pool_mat = mean_pool_matrix(batch, n_graphs)

        out = semantic_aware_gnn_forward(a_pad, x, w1, b1, w2, b2,
                                         pool_mat, wl, bl,
                                         force_tiled=force_tiled, **tile_kw)
        jax.block_until_ready(out)

        # pure-JAX f32 reference (kernel uses bf16 adjacency/activations)
        a_ref = gcn_norm_dense_padded(edge_index, n_nodes, n_nodes, jnp.float32)
        h1 = jnp.maximum(a_ref @ (x @ w1) + b1, 0.0)
        h2 = a_ref @ (h1 @ w2) + b2
        ref = (pool_mat @ h2) @ wl.T + bl

        assert out.shape == (n_graphs, LENGTH)
        assert bool(jnp.all(jnp.isfinite(out)))
        assert jnp.allclose(out, ref, atol=3e-2, rtol=3e-2), (out, ref)

    # 1) Fused single-kernel fast path (everything VMEM-resident), demo size.
    run_case(n_graphs=2, nodes_per_graph=8, force_tiled=False)
    # 2) Tiled path: 3 row tiles x 3 contraction steps, resident-Z slicing,
    #    pool/linear accumulation across steps.
    run_case(n_graphs=3, nodes_per_graph=128, force_tiled=True, max_tile_k=128)

    print("KERNEL_OK")
</pallas_src>

<mosaic_0001>
module attributes {stable_mosaic.version = 11 : i64} {
  func.func @_fused_kernel(%arg0: memref<128x128xbf16, #tpu.memory_space<vmem>>, %arg1: memref<128x128xbf16, #tpu.memory_space<vmem>>, %arg2: memref<128x128xbf16, #tpu.memory_space<vmem>>, %arg3: memref<1x128xf32, #tpu.memory_space<vmem>>, %arg4: memref<128x128xbf16, #tpu.memory_space<vmem>>, %arg5: memref<1x128xf32, #tpu.memory_space<vmem>>, %arg6: memref<8x128xbf16, #tpu.memory_space<vmem>>, %arg7: memref<128x128xf32, #tpu.memory_space<vmem>>, %arg8: memref<1x128xf32, #tpu.memory_space<vmem>>, %arg9: memref<8x128xf32, #tpu.memory_space<vmem>>) attributes {dimension_semantics = [], scalar_prefetch = 0 : i64, scratch_operands = 0 : i64, tpu.core_type = #tpu.core_type<tc>} {
    %c0 = arith.constant 0 : index
    %c0_0 = arith.constant 0 : index
    %0 = vector.load %arg1[%c0, %c0_0] : memref<128x128xbf16, #tpu.memory_space<vmem>>, vector<128x128xbf16>
    %c0_1 = arith.constant 0 : index
    %c0_2 = arith.constant 0 : index
    %1 = vector.load %arg2[%c0_1, %c0_2] : memref<128x128xbf16, #tpu.memory_space<vmem>>, vector<128x128xbf16>
    %cst = arith.constant dense<0.000000e+00> : vector<128x128xf32>
    %2 = tpu.matmul %0, %1, %cst {dimension_numbers = #tpu.dot_dimension_numbers<[1], [0], [0], [1], [0, 0, 1, 1], [], []>} : vector<128x128xbf16>, vector<128x128xbf16>, vector<128x128xf32> -> vector<128x128xf32>
    %c0_3 = arith.constant 0 : index
    %c0_4 = arith.constant 0 : index
    %3 = vector.load %arg0[%c0_3, %c0_4] : memref<128x128xbf16, #tpu.memory_space<vmem>>, vector<128x128xbf16>
    %4 = arith.truncf %2 : vector<128x128xf32> to vector<128x128xbf16>
    %cst_5 = arith.constant dense<0.000000e+00> : vector<128x128xf32>
    %5 = tpu.matmul %3, %4, %cst_5 {dimension_numbers = #tpu.dot_dimension_numbers<[1], [0], [0], [1], [0, 0, 1, 1], [], []>} : vector<128x128xbf16>, vector<128x128xbf16>, vector<128x128xf32> -> vector<128x128xf32>
    %c0_6 = arith.constant 0 : index
    %c0_7 = arith.constant 0 : index
    %6 = vector.load %arg3[%c0_6, %c0_7] : memref<1x128xf32, #tpu.memory_space<vmem>>, vector<1x128xf32>
    %7 = vector.broadcast %6 : vector<1x128xf32> to vector<128x128xf32>
    %8 = arith.addf %5, %7 : vector<128x128xf32>
    %cst_8 = arith.constant 0.000000e+00 : f32
    %9 = vector.broadcast %cst_8 : f32 to vector<128x128xf32>
    %10 = arith.maximumf %8, %9 : vector<128x128xf32>
    %11 = arith.truncf %10 : vector<128x128xf32> to vector<128x128xbf16>
    %c0_9 = arith.constant 0 : index
    %c0_10 = arith.constant 0 : index
    %12 = vector.load %arg4[%c0_9, %c0_10] : memref<128x128xbf16, #tpu.memory_space<vmem>>, vector<128x128xbf16>
    %cst_11 = arith.constant dense<0.000000e+00> : vector<128x128xf32>
    %13 = tpu.matmul %11, %12, %cst_11 {dimension_numbers = #tpu.dot_dimension_numbers<[1], [0], [0], [1], [0, 0, 1, 1], [], []>} : vector<128x128xbf16>, vector<128x128xbf16>, vector<128x128xf32> -> vector<128x128xf32>
    %c0_12 = arith.constant 0 : index
    %c0_13 = arith.constant 0 : index
    %14 = vector.load %arg0[%c0_12, %c0_13] : memref<128x128xbf16, #tpu.memory_space<vmem>>, vector<128x128xbf16>
    %15 = arith.truncf %13 : vector<128x128xf32> to vector<128x128xbf16>
    %cst_14 = arith.constant dense<0.000000e+00> : vector<128x128xf32>
    %16 = tpu.matmul %14, %15, %cst_14 {dimension_numbers = #tpu.dot_dimension_numbers<[1], [0], [0], [1], [0, 0, 1, 1], [], []>} : vector<128x128xbf16>, vector<128x128xbf16>, vector<128x128xf32> -> vector<128x128xf32>
    %c0_15 = arith.constant 0 : index
    %c0_16 = arith.constant 0 : index
    %17 = vector.load %arg5[%c0_15, %c0_16] : memref<1x128xf32, #tpu.memory_space<vmem>>, vector<1x128xf32>
    %18 = vector.broadcast %17 : vector<1x128xf32> to vector<128x128xf32>
    %19 = arith.addf %16, %18 : vector<128x128xf32>
    %c0_17 = arith.constant 0 : index
    %c0_18 = arith.constant 0 : index
    %20 = vector.load %arg6[%c0_17, %c0_18] : memref<8x128xbf16, #tpu.memory_space<vmem>>, vector<8x128xbf16>
    %21 = arith.truncf %19 : vector<128x128xf32> to vector<128x128xbf16>
    %cst_19 = arith.constant dense<0.000000e+00> : vector<8x128xf32>
    %22 = tpu.matmul %20, %21, %cst_19 {dimension_numbers = #tpu.dot_dimension_numbers<[1], [0], [0], [1], [0, 0, 1, 1], [], []>} : vector<8x128xbf16>, vector<128x128xbf16>, vector<8x128xf32> -> vector<8x128xf32>
    %c0_20 = arith.constant 0 : index
    %c0_21 = arith.constant 0 : index
    %23 = vector.load %arg7[%c0_20, %c0_21] : memref<128x128xf32, #tpu.memory_space<vmem>>, vector<128x128xf32>
    %cst_22 = arith.constant dense<0.000000e+00> : vector<8x128xf32>
    %24 = tpu.matmul %22, %23, %cst_22 {dimension_numbers = #tpu.dot_dimension_numbers<[1], [0], [0], [1], [0, 0, 1, 1], [], []>} : vector<8x128xf32>, vector<128x128xf32>, vector<8x128xf32> -> vector<8x128xf32>
    %c0_23 = arith.constant 0 : index
    %c0_24 = arith.constant 0 : index
    %25 = vector.load %arg8[%c0_23, %c0_24] : memref<1x128xf32, #tpu.memory_space<vmem>>, vector<1x128xf32>
    %26 = vector.broadcast %25 : vector<1x128xf32> to vector<8x128xf32>
    %27 = arith.addf %24, %26 : vector<8x128xf32>
    %c0_25 = arith.constant 0 : index
    %c0_26 = arith.constant 0 : index
    %28 = vector.load %arg9[%c0_25, %c0_26] : memref<8x128xf32, #tpu.memory_space<vmem>>, vector<8x128xf32>
    tpu.vector_store %arg9[%c0_25, %c0_26], %27 {strides = array<i32>} : memref<8x128xf32, #tpu.memory_space<vmem>>, vector<8x128xf32>,
    return
  }
}

</mosaic_0001>

<llo_original>
// kernel: tpu_custom_call.1
$region0: #{tpu_custom_call.1}
  #allocation0 [shape = 'u32[]', space=smem, size = 0x4, offset = 0x4, fixed_abs, tag = 'smem constant byte address 0x4 - core index']
  #allocation1 [shape = 'u32[144,128]{1,0:T(1,128)}', space=vmem, size = 0x12000, scoped, tag = 'internal scratch']
  %s0 = inlined_call_operand.hbm [shape: bf16[128,128], index: 0, kind: input, shape index: {}]
  %s1 = inlined_call_operand.hbm [shape: bf16[128,128], index: 1, kind: input, shape index: {}]
  %s2 = inlined_call_operand.hbm [shape: bf16[128,128], index: 2, kind: input, shape index: {}]
  %s3 = inlined_call_operand.vmem [shape: f32[1,128], index: 3, kind: input, shape index: {}]
  %s4 = inlined_call_operand.hbm [shape: bf16[128,128], index: 4, kind: input, shape index: {}]
  %s5 = inlined_call_operand.vmem [shape: f32[1,128], index: 5, kind: input, shape index: {}]
  %s6 = inlined_call_operand.vmem [shape: bf16[8,128], index: 6, kind: input, shape index: {}]
  %s7 = inlined_call_operand.hbm [shape: f32[128,128], index: 7, kind: input, shape index: {}]
  %s8 = inlined_call_operand.vmem [shape: f32[1,128], index: 8, kind: input, shape index: {}]
  %s9 = inlined_call_operand.hbm [shape: f32[8,128], index: 9, kind: output, shape index: {}]
  %s10 = sld [smem:[#allocation0]]
  $region66: #{tpu_custom_call.1} parent=0
    _
  %s12 = ssub.s32 1, %s10
  %s13 = scalar_select 0, %s12, %s10
  $region1: #{tpu_custom_call.1} parent=0
    #allocation2 [shape = 'u8[32768]{0}', space=vmem, size = 0x8000, scoped, tag = 'input window, operand 0, single buffered']
    #allocation3 [shape = 's32[1]{0}', space=sflag, size = 0x4, scoped, tag = 'scoped memory for tpu_custom_call.1']
    #allocation4 [shape = 's32[1]{0}', space=sflag, size = 0x4, scoped, tag = 'scoped memory for tpu_custom_call.1']
    #allocation5 [shape = 'u8[32768]{0}', space=vmem, size = 0x8000, scoped, tag = 'input window, operand 1, single buffered']
    #allocation6 [shape = 's32[1]{0}', space=sflag, size = 0x4, scoped, tag = 'scoped memory for tpu_custom_call.1']
    #allocation7 [shape = 'u8[32768]{0}', space=vmem, size = 0x8000, scoped, tag = 'input window, operand 2, single buffered']
    #allocation8 [shape = 'u8[32768]{0}', space=vmem, size = 0x8000, scoped, tag = 'input window, operand 4, single buffered']
    #allocation9 [shape = 's32[1]{0}', space=sflag, size = 0x4, scoped, tag = 'scoped memory for tpu_custom_call.1']
    #allocation10 [shape = 'u8[65536]{0}', space=vmem, size = 0x10000, scoped, tag = 'input window, operand 7, single buffered']
    #allocation11 [shape = 'u8[4096]{0}', space=vmem, size = 0x1000, scoped, tag = 'output window, operand 0, single buffered']
    %14 = vsyncpa [#allocation3], 0
    %15 = vsyncpa [#allocation6], 0
    %16 = vsyncpa [#allocation9], 0
    %17 = vsyncpa [#allocation4], 0
    // Predicated region
    $region2: #{tpu_custom_call.1} parent=1 // pred_check
      _
    $region3: #{tpu_custom_call.1} parent=1 // pred_check_branch
      %19 = sbr.rel (0) target = $region5
    $region4: #{tpu_custom_call.1} parent=1 // pred_region
      %s21 = ssub.s32 1024, 1024
      %22 = vsyncadd [#allocation3], %s21
      %s23 = sshll.u32 [#allocation2], 4
      %s24 = int_to_ptr.vmem [resolvable:$true] %s23
      %29 = dma.hbm_to_vmem [thread:$0]  %s0, 1024, %s24, [#allocation3], 64, 64, 4
    $region5: #{tpu_custom_call.1} parent=1 // pred_fallthru
      _
    // Predicated region
    $region6: #{tpu_custom_call.1} parent=1 // pred_check
      _
    $region7: #{tpu_custom_call.1} parent=1 // pred_check_branch
      %31 = sbr.rel (0) target = $region9
    $region8: #{tpu_custom_call.1} parent=1 // pred_region
      %s33 = ssub.s32 1024, 1024
      %34 = vsyncadd [#allocation6], %s33
      %s35 = sshll.u32 [#allocation5], 4
      %s36 = int_to_ptr.vmem [resolvable:$true] %s35
      %41 = dma.hbm_to_vmem [thread:$0]  %s1, 1024, %s36, [#allocation6], 64, 64, 4
    $region9: #{tpu_custom_call.1} parent=1 // pred_fallthru
      _
    // Predicated region
    $region10: #{tpu_custom_call.1} parent=1 // pred_check
      _
    $region11: #{tpu_custom_call.1} parent=1 // pred_check_branch
      %43 = sbr.rel (0) target = $region13
    $region12: #{tpu_custom_call.1} parent=1 // pred_region
      %s45 = ssub.s32 1024, 1024
      %46 = vsyncadd [#allocation6], %s45
      %s47 = sshll.u32 [#allocation7], 4
      %s48 = int_to_ptr.vmem [resolvable:$true] %s47
      %53 = dma.hbm_to_vmem [thread:$0]  %s2, 1024, %s48, [#allocation6], 64, 64, 4
    $region13: #{tpu_custom_call.1} parent=1 // pred_fallthru
      _
    // Predicated region
    $region14: #{tpu_custom_call.1} parent=1 // pred_check
      _
    $region15: #{tpu_custom_call.1} parent=1 // pred_check_branch
      %55 = sbr.rel (0) target = $region17
    $region16: #{tpu_custom_call.1} parent=1 // pred_region
      _
    $region17: #{tpu_custom_call.1} parent=1 // pred_fallthru
      _
    // Predicated region
    $region18: #{tpu_custom_call.1} parent=1 // pred_check
      _
    $region19: #{tpu_custom_call.1} parent=1 // pred_check_branch
      %57 = sbr.rel (0) target = $region21
    $region20: #{tpu_custom_call.1} parent=1 // pred_region
      %s59 = ssub.s32 1024, 1024
      %60 = vsyncadd [#allocation9], %s59
      %s61 = sshll.u32 [#allocation8], 4
      %s62 = int_to_ptr.vmem [resolvable:$true] %s61
      %67 = dma.hbm_to_vmem [thread:$0]  %s4, 1024, %s62, [#allocation9], 64, 64, 4
    $region21: #{tpu_custom_call.1} parent=1 // pred_fallthru
      _
    // Predicated region
    $region22: #{tpu_custom_call.1} parent=1 // pred_check
      _
    $region23: #{tpu_custom_call.1} parent=1 // pred_check_branch
      %69 = sbr.rel (0) target = $region25
    $region24: #{tpu_custom_call.1} parent=1 // pred_region
      _
    $region25: #{tpu_custom_call.1} parent=1 // pred_fallthru
      _
    // Predicated region
    $region26: #{tpu_custom_call.1} parent=1 // pred_check
      _
    $region27: #{tpu_custom_call.1} parent=1 // pred_check_branch
      %71 = sbr.rel (0) target = $region29
    $region28: #{tpu_custom_call.1} parent=1 // pred_region
      _
    $region29: #{tpu_custom_call.1} parent=1 // pred_fallthru
      _
    // Predicated region
    $region30: #{tpu_custom_call.1} parent=1 // pred_check
      _
    $region31: #{tpu_custom_call.1} parent=1 // pred_check_branch
      %73 = sbr.rel (0) target = $region33
    $region32: #{tpu_custom_call.1} parent=1 // pred_region
      %s75 = ssub.s32 2048, 2048
      %76 = vsyncadd [#allocation9], %s75
      %s77 = sshll.u32 [#allocation10], 4
      %s78 = int_to_ptr.vmem [resolvable:$true] %s77
      %83 = dma.hbm_to_vmem [thread:$0]  %s7, 2048, %s78, [#allocation9], 128, 128, 8
    $region33: #{tpu_custom_call.1} parent=1 // pred_fallthru
      _
    // Predicated region
    $region34: #{tpu_custom_call.1} parent=1 // pred_check
      _
    $region35: #{tpu_custom_call.1} parent=1 // pred_check_branch
      %85 = sbr.rel (0) target = $region37
    $region36: #{tpu_custom_call.1} parent=1 // pred_region
      _
    $region37: #{tpu_custom_call.1} parent=1 // pred_fallthru
      _
    // Predicated region
    $region38: #{tpu_custom_call.1} parent=1 // pred_check
      _
    $region39: #{tpu_custom_call.1} parent=1 // pred_check_branch
      %87 = sbr.rel (0) target = $region41
    $region40: #{tpu_custom_call.1} parent=1 // pred_region
      %88 = dma.done [#allocation3], 1024
    $region41: #{tpu_custom_call.1} parent=1 // pred_fallthru
      _
    // Predicated region
    $region42: #{tpu_custom_call.1} parent=1 // pred_check
      _
    $region43: #{tpu_custom_call.1} parent=1 // pred_check_branch
      %90 = sbr.rel (0) target = $region45
    $region44: #{tpu_custom_call.1} parent=1 // pred_region
      %91 = dma.done [#allocation6], 1024
    $region45: #{tpu_custom_call.1} parent=1 // pred_fallthru
      _
    // Predicated region
    $region46: #{tpu_custom_call.1} parent=1 // pred_check
      _
    $region47: #{tpu_custom_call.1} parent=1 // pred_check_branch
      %93 = sbr.rel (0) target = $region49
    $region48: #{tpu_custom_call.1} parent=1 // pred_region
      %94 = dma.done [#allocation6], 1024
    $region49: #{tpu_custom_call.1} parent=1 // pred_fallthru
      _
    // Predicated region
    $region50: #{tpu_custom_call.1} parent=1 // pred_check
      _
    $region51: #{tpu_custom_call.1} parent=1 // pred_check_branch
      %96 = sbr.rel (0) target = $region53
    $region52: #{tpu_custom_call.1} parent=1 // pred_region
      %97 = dma.done [#allocation9], 1024
    $region53: #{tpu_custom_call.1} parent=1 // pred_fallthru
      _
    // Predicated region
    $region54: #{tpu_custom_call.1} parent=1 // pred_check
      _
    $region55: #{tpu_custom_call.1} parent=1 // pred_check_branch
      %99 = sbr.rel (0) target = $region57
    $region56: #{tpu_custom_call.1} parent=1 // pred_region
      %100 = dma.done [#allocation9], 2048
    $region57: #{tpu_custom_call.1} parent=1 // pred_fallthru
      _
    %v102 = vld [vmem:[#allocation5] sm:$0xf]
    %v103 = vld [vmem:[#allocation5 + $0x4] sm:$0xf]
    %v104 = vld [vmem:[#allocation5 + $0x8] sm:$0xf]
    %v105 = vld [vmem:[#allocation5 + $0xc] sm:$0xf]
    %v106 = vld [vmem:[#allocation5 + $0x10] sm:$0xf]
    %v107 = vld [vmem:[#allocation5 + $0x14] sm:$0xf]
    %v108 = vld [vmem:[#allocation5 + $0x18] sm:$0xf]
    %v109 = vld [vmem:[#allocation5 + $0x1c] sm:$0xf]
    %v110 = vld [vmem:[#allocation5 + $0x20] sm:$0xf]
    %v111 = vld [vmem:[#allocation5 + $0x24] sm:$0xf]
    %v112 = vld [vmem:[#allocation5 + $0x28] sm:$0xf]
    %v113 = vld [vmem:[#allocation5 + $0x2c] sm:$0xf]
    %v114 = vld [vmem:[#allocation5 + $0x30] sm:$0xf]
    %v115 = vld [vmem:[#allocation5 + $0x34] sm:$0xf]
    %v116 = vld [vmem:[#allocation5 + $0x38] sm:$0xf]
    %v117 = vld [vmem:[#allocation5 + $0x3c] sm:$0xf]
    %v118 = vld [vmem:[#allocation7] sm:$0xf]
    %v119 = vld [vmem:[#allocation7 + $0x4] sm:$0xf]
    %v120 = vld [vmem:[#allocation7 + $0x8] sm:$0xf]
    %v121 = vld [vmem:[#allocation7 + $0xc] sm:$0xf]
    %v122 = vld [vmem:[#allocation7 + $0x10] sm:$0xf]
    %v123 = vld [vmem:[#allocation7 + $0x14] sm:$0xf]
    %v124 = vld [vmem:[#allocation7 + $0x18] sm:$0xf]
    %v125 = vld [vmem:[#allocation7 + $0x1c] sm:$0xf]
    %v126 = vld [vmem:[#allocation7 + $0x20] sm:$0xf]
    %v127 = vld [vmem:[#allocation7 + $0x24] sm:$0xf]
    %v128 = vld [vmem:[#allocation7 + $0x28] sm:$0xf]
    %v129 = vld [vmem:[#allocation7 + $0x2c] sm:$0xf]
    %v130 = vld [vmem:[#allocation7 + $0x30] sm:$0xf]
    %v131 = vld [vmem:[#allocation7 + $0x34] sm:$0xf]
    %v132 = vld [vmem:[#allocation7 + $0x38] sm:$0xf]
    %v133 = vld [vmem:[#allocation7 + $0x3c] sm:$0xf]
    %v150 = vunpack.c.l.b16 %v102
    %v151 = vunpack.c.l.b16 %v103
    %v152 = vunpack.c.l.b16 %v104
    %v153 = vunpack.c.l.b16 %v105
    %v154 = vunpack.c.l.b16 %v106
    %v155 = vunpack.c.l.b16 %v107
    %v156 = vunpack.c.l.b16 %v108
    %v157 = vunpack.c.l.b16 %v109
    %v158 = vunpack.c.l.b16 %v110
    %v159 = vunpack.c.l.b16 %v111
    %v160 = vunpack.c.l.b16 %v112
    %v161 = vunpack.c.l.b16 %v113
    %v162 = vunpack.c.l.b16 %v114
    %v163 = vunpack.c.l.b16 %v115
    %v164 = vunpack.c.l.b16 %v116
    %v165 = vunpack.c.l.b16 %v117
    %v166 = vpack.c.b16 %v151, %v150
    %v167 = vpack.c.b16 %v153, %v152
    %v168 = vpack.c.b16 %v155, %v154
    %v169 = vpack.c.b16 %v157, %v156
    %v170 = vpack.c.b16 %v159, %v158
    %v171 = vpack.c.b16 %v161, %v160
    %v172 = vpack.c.b16 %v163, %v162
    %v173 = vpack.c.b16 %v165, %v164
    %v198 = vunpack.c.l.b16 %v118
    %v199 = vunpack.c.l.b16 %v119
    %v200 = vunpack.c.l.b16 %v120
    %v201 = vunpack.c.l.b16 %v121
    %v202 = vunpack.c.l.b16 %v122
    %v203 = vunpack.c.l.b16 %v123
    %v204 = vunpack.c.l.b16 %v124
    %v205 = vunpack.c.l.b16 %v125
    %v206 = vunpack.c.l.b16 %v126
    %v207 = vunpack.c.l.b16 %v127
    %v208 = vunpack.c.l.b16 %v128
    %v209 = vunpack.c.l.b16 %v129
    %v210 = vunpack.c.l.b16 %v130
    %v211 = vunpack.c.l.b16 %v131
    %v212 = vunpack.c.l.b16 %v132
    %v213 = vunpack.c.l.b16 %v133
    %v214 = vpack.c.b16 %v199, %v198
    %v215 = vpack.c.b16 %v201, %v200
    %v216 = vpack.c.b16 %v203, %v202
    %v217 = vpack.c.b16 %v205, %v204
    %v218 = vpack.c.b16 %v207, %v206
    %v219 = vpack.c.b16 %v209, %v208
    %v220 = vpack.c.b16 %v211, %v210
    %v221 = vpack.c.b16 %v213, %v212
    %230 = vmatprep.subr.bf16.mxu0 0
    %231 = vmatpush1.bf16.msra.mxu0 %v221
    %232 = vmatprep.subr.bf16.mxu0 0
    %233 = vmatpush1.bf16.msra.mxu0 %v220
    %234 = vmatprep.subr.bf16.mxu0 0
    %235 = vmatpush1.bf16.msra.mxu0 %v219
    %236 = vmatprep.subr.bf16.mxu0 0
    %237 = vmatpush1.bf16.msra.mxu0 %v218
    %238 = vmatprep.subr.bf16.mxu0 0
    %239 = vmatpush1.bf16.msra.mxu0 %v217
    %240 = vmatprep.subr.bf16.mxu0 0
    %241 = vmatpush1.bf16.msra.mxu0 %v216
    %242 = vmatprep.subr.bf16.mxu0 0
    %243 = vmatpush1.bf16.msra.mxu0 %v215
    %244 = vmatprep.subr.bf16.mxu0 0
    %245 = vmatpush1.bf16.msra.mxu0 %v214
    %246 = vmatprep.subr.bf16.mxu0 0
    %247 = vmatpush2.bf16.msra.mxu0 0
    %248 = vmatprep.subr.bf16.mxu0 0
    %249 = vmatpush2.bf16.msra.mxu0 0
    %250 = vmatprep.subr.bf16.mxu0 0
    %251 = vmatpush2.bf16.msra.mxu0 0
    %252 = vmatprep.subr.bf16.mxu0 0
    %253 = vmatpush2.bf16.msra.mxu0 0
    %254 = vmatprep.subr.bf16.mxu0 0
    %255 = vmatpush2.bf16.msra.mxu0 0
    %256 = vmatprep.subr.bf16.mxu0 0
    %257 = vmatpush2.bf16.msra.mxu0 0
    %258 = vmatprep.subr.bf16.mxu0 0
    %259 = vmatpush2.bf16.msra.mxu0 0
    %260 = vmatprep.subr.bf16.mxu0 0
    %261 = vmatpush2.bf16.msra.mxu0 0
    %262 = vmatprep.mubr.bf16.mxu0 0
    %263 = vmatmul.mubr.bf16.gmra.mxu0 %v166
    %v264 = vpop.f32.mrf.mxu0
    %v265 = vadd.f32 0.0, %v264
    %v266 = vpop.f32.mrf.mxu0
    %v267 = vpop.f32.mrf.mxu0
    %v268 = vadd.f32 0.0, %v267
    %v269 = vpop.f32.mrf.mxu0
    %270 = vmatprep.mubr.bf16.mxu0 0
    %271 = vmatmul.mubr.bf16.gmra.mxu0 %v167
    %v272 = vpop.f32.mrf.mxu0
    %v273 = vadd.f32 0.0, %v272
    %v274 = vpop.f32.mrf.mxu0
    %v275 = vpop.f32.mrf.mxu0
    %v276 = vadd.f32 0.0, %v275
    %v277 = vpop.f32.mrf.mxu0
    %278 = vmatprep.mubr.bf16.mxu0 0
    %279 = vmatmul.mubr.bf16.gmra.mxu0 %v168
    %v280 = vpop.f32.mrf.mxu0
    %v281 = vadd.f32 0.0, %v280
    %v282 = vpop.f32.mrf.mxu0
    %v283 = vpop.f32.mrf.mxu0
    %v284 = vadd.f32 0.0, %v283
    %v285 = vpop.f32.mrf.mxu0
    %286 = vmatprep.mubr.bf16.mxu0 0
    %287 = vmatmul.mubr.bf16.gmra.mxu0 %v169
    %v288 = vpop.f32.mrf.mxu0
    %v289 = vadd.f32 0.0, %v288
    %v290 = vpop.f32.mrf.mxu0
    %v291 = vpop.f32.mrf.mxu0
    %v292 = vadd.f32 0.0, %v291
    %v293 = vpop.f32.mrf.mxu0
    %294 = vmatprep.mubr.bf16.mxu0 0
    %295 = vmatmul.mubr.bf16.gmra.mxu0 %v170
    %v296 = vpop.f32.mrf.mxu0
    %v297 = vadd.f32 0.0, %v296
    %v298 = vpop.f32.mrf.mxu0
    %v299 = vpop.f32.mrf.mxu0
    %v300 = vadd.f32 0.0, %v299
    %v301 = vpop.f32.mrf.mxu0
    %302 = vmatprep.mubr.bf16.mxu0 0
    %303 = vmatmul.mubr.bf16.gmra.mxu0 %v171
    %v304 = vpop.f32.mrf.mxu0
    %v305 = vadd.f32 0.0, %v304
    %v306 = vpop.f32.mrf.mxu0
    %v307 = vpop.f32.mrf.mxu0
    %v308 = vadd.f32 0.0, %v307
    %v309 = vpop.f32.mrf.mxu0
    %310 = vmatprep.mubr.bf16.mxu0 0
    %311 = vmatmul.mubr.bf16.gmra.mxu0 %v172
    %v312 = vpop.f32.mrf.mxu0
    %v313 = vadd.f32 0.0, %v312
    %v314 = vpop.f32.mrf.mxu0
    %v315 = vpop.f32.mrf.mxu0
    %v316 = vadd.f32 0.0, %v315
    %v317 = vpop.f32.mrf.mxu0
    %318 = vmatprep.mubr.bf16.mxu0 0
    %319 = vmatmul.mubr.bf16.gmra.mxu0 %v173
    %v320 = vpop.f32.mrf.mxu0
    %v321 = vadd.f32 0.0, %v320
    %v322 = vpop.f32.mrf.mxu0
    %v323 = vpop.f32.mrf.mxu0
    %v324 = vadd.f32 0.0, %v323
    %v325 = vpop.f32.mrf.mxu0
    %326 = vdwg.mxu0
    %v327 = vld [vmem:[#allocation2] sm:$0xf]
    %v328 = vld [vmem:[#allocation2 + $0x4] sm:$0xf]
    %v329 = vld [vmem:[#allocation2 + $0x8] sm:$0xf]
    %v330 = vld [vmem:[#allocation2 + $0xc] sm:$0xf]
    %v331 = vld [vmem:[#allocation2 + $0x10] sm:$0xf]
    %v332 = vld [vmem:[#allocation2 + $0x14] sm:$0xf]
    %v333 = vld [vmem:[#allocation2 + $0x18] sm:$0xf]
    %v334 = vld [vmem:[#allocation2 + $0x1c] sm:$0xf]
    %v335 = vld [vmem:[#allocation2 + $0x20] sm:$0xf]
    %v336 = vld [vmem:[#allocation2 + $0x24] sm:$0xf]
    %v337 = vld [vmem:[#allocation2 + $0x28] sm:$0xf]
    %v338 = vld [vmem:[#allocation2 + $0x2c] sm:$0xf]
    %v339 = vld [vmem:[#allocation2 + $0x30] sm:$0xf]
    %v340 = vld [vmem:[#allocation2 + $0x34] sm:$0xf]
    %v341 = vld [vmem:[#allocation2 + $0x38] sm:$0xf]
    %v342 = vld [vmem:[#allocation2 + $0x3c] sm:$0xf]
    %v343 = vpack.c.bf16 %v268, %v265
    %v344 = vpack.c.bf16 %v276, %v273
    %v345 = vpack.c.bf16 %v284, %v281
    %v346 = vpack.c.bf16 %v292, %v289
    %v347 = vpack.c.bf16 %v300, %v297
    %v348 = vpack.c.bf16 %v308, %v305
    %v349 = vpack.c.bf16 %v316, %v313
    %v350 = vpack.c.bf16 %v324, %v321
    %v351 = vld [vmem:[%s3] sm:$0x1]
    %v353 = vlaneseq
    %v354 = vshrl.u32 %v353, 7
    %v355 = vsub.s32 0, %v354
    %v356 = vrot.slane %v351, %v355
    %v374 = vunpack.c.l.b16 %v327
    %v375 = vunpack.c.l.b16 %v328
    %v376 = vunpack.c.l.b16 %v329
    %v377 = vunpack.c.l.b16 %v330
    %v378 = vunpack.c.l.b16 %v331
    %v379 = vunpack.c.l.b16 %v332
    %v380 = vunpack.c.l.b16 %v333
    %v381 = vunpack.c.l.b16 %v334
    %v382 = vunpack.c.l.b16 %v335
    %v383 = vunpack.c.l.b16 %v336
    %v384 = vunpack.c.l.b16 %v337
    %v385 = vunpack.c.l.b16 %v338
    %v386 = vunpack.c.l.b16 %v339
    %v387 = vunpack.c.l.b16 %v340
    %v388 = vunpack.c.l.b16 %v341
    %v389 = vunpack.c.l.b16 %v342
    %v390 = vpack.c.b16 %v375, %v374
    %v391 = vpack.c.b16 %v377, %v376
    %v392 = vpack.c.b16 %v379, %v378
    %v393 = vpack.c.b16 %v381, %v380
    %v394 = vpack.c.b16 %v383, %v382
    %v395 = vpack.c.b16 %v385, %v384
    %v396 = vpack.c.b16 %v387, %v386
    %v397 = vpack.c.b16 %v389, %v388
    %406 = vmatprep.subr.bf16.mxu0 0
    %407 = vmatpush1.bf16.msra.mxu0 %v350
    %408 = vmatprep.subr.bf16.mxu0 0
    %409 = vmatpush1.bf16.msra.mxu0 %v349
    %410 = vmatprep.subr.bf16.mxu0 0
    %411 = vmatpush1.bf16.msra.mxu0 %v348
    %412 = vmatprep.subr.bf16.mxu0 0
    %413 = vmatpush1.bf16.msra.mxu0 %v347
    %414 = vmatprep.subr.bf16.mxu0 0
    %415 = vmatpush1.bf16.msra.mxu0 %v346
    %416 = vmatprep.subr.bf16.mxu0 0
    %417 = vmatpush1.bf16.msra.mxu0 %v345
    %418 = vmatprep.subr.bf16.mxu0 0
    %419 = vmatpush1.bf16.msra.mxu0 %v344
    %420 = vmatprep.subr.bf16.mxu0 0
    %421 = vmatpush1.bf16.msra.mxu0 %v343
    %422 = vmatprep.subr.bf16.mxu0 0
    %423 = vmatpush2.bf16.msra.mxu0 0
    %424 = vmatprep.subr.bf16.mxu0 0
    %425 = vmatpush2.bf16.msra.mxu0 0
    %426 = vmatprep.subr.bf16.mxu0 0
    %427 = vmatpush2.bf16.msra.mxu0 0
    %428 = vmatprep.subr.bf16.mxu0 0
    %429 = vmatpush2.bf16.msra.mxu0 0
    %430 = vmatprep.subr.bf16.mxu0 0
    %431 = vmatpush2.bf16.msra.mxu0 0
    %432 = vmatprep.subr.bf16.mxu0 0
    %433 = vmatpush2.bf16.msra.mxu0 0
    %434 = vmatprep.subr.bf16.mxu0 0
    %435 = vmatpush2.bf16.msra.mxu0 0
    %436 = vmatprep.subr.bf16.mxu0 0
    %437 = vmatpush2.bf16.msra.mxu0 0
    %438 = vmatprep.mubr.bf16.mxu0 0
    %439 = vmatmul.mubr.bf16.gmra.mxu0 %v390
    %v440 = vpop.f32.mrf.mxu0
    %v441 = vadd.f32 %v356, %v440
    %v442 = vpop.f32.mrf.mxu0
    %v443 = vpop.f32.mrf.mxu0
    %v444 = vadd.f32 %v356, %v443
    %v445 = vpop.f32.mrf.mxu0
    %446 = vmatprep.mubr.bf16.mxu0 0
    %447 = vmatmul.mubr.bf16.gmra.mxu0 %v391
    %v448 = vpop.f32.mrf.mxu0
    %v449 = vadd.f32 %v356, %v448
    %v450 = vpop.f32.mrf.mxu0
    %v451 = vpop.f32.mrf.mxu0
    %v452 = vadd.f32 %v356, %v451
    %v453 = vpop.f32.mrf.mxu0
    %454 = vmatprep.mubr.bf16.mxu0 0
    %455 = vmatmul.mubr.bf16.gmra.mxu0 %v392
    %v456 = vpop.f32.mrf.mxu0
    %v457 = vadd.f32 %v356, %v456
    %v458 = vpop.f32.mrf.mxu0
    %v459 = vpop.f32.mrf.mxu0
    %v460 = vadd.f32 %v356, %v459
    %v461 = vpop.f32.mrf.mxu0
    %462 = vmatprep.mubr.bf16.mxu0 0
    %463 = vmatmul.mubr.bf16.gmra.mxu0 %v393
    %v464 = vpop.f32.mrf.mxu0
    %v465 = vadd.f32 %v356, %v464
    %v466 = vpop.f32.mrf.mxu0
    %v467 = vpop.f32.mrf.mxu0
    %v468 = vadd.f32 %v356, %v467
    %v469 = vpop.f32.mrf.mxu0
    %470 = vmatprep.mubr.bf16.mxu0 0
    %471 = vmatmul.mubr.bf16.gmra.mxu0 %v394
    %v472 = vpop.f32.mrf.mxu0
    %v473 = vadd.f32 %v356, %v472
    %v474 = vpop.f32.mrf.mxu0
    %v475 = vpop.f32.mrf.mxu0
    %v476 = vadd.f32 %v356, %v475
    %v477 = vpop.f32.mrf.mxu0
    %478 = vmatprep.mubr.bf16.mxu0 0
    %479 = vmatmul.mubr.bf16.gmra.mxu0 %v395
    %v480 = vpop.f32.mrf.mxu0
    %v481 = vadd.f32 %v356, %v480
    %v482 = vpop.f32.mrf.mxu0
    %v483 = vpop.f32.mrf.mxu0
    %v484 = vadd.f32 %v356, %v483
    %v485 = vpop.f32.mrf.mxu0
    %486 = vmatprep.mubr.bf16.mxu0 0
    %487 = vmatmul.mubr.bf16.gmra.mxu0 %v396
    %v488 = vpop.f32.mrf.mxu0
    %v489 = vadd.f32 %v356, %v488
    %v490 = vpop.f32.mrf.mxu0
    %v491 = vpop.f32.mrf.mxu0
    %v492 = vadd.f32 %v356, %v491
    %v493 = vpop.f32.mrf.mxu0
    %494 = vmatprep.mubr.bf16.mxu0 0
    %495 = vmatmul.mubr.bf16.gmra.mxu0 %v397
    %v496 = vpop.f32.mrf.mxu0
    %v497 = vadd.f32 %v356, %v496
    %v498 = vpop.f32.mrf.mxu0
    %v499 = vpop.f32.mrf.mxu0
    %v500 = vadd.f32 %v356, %v499
    %v501 = vpop.f32.mrf.mxu0
    %502 = vdwg.mxu0
    %v503 = vmax.f32 %v441, 0.0
    %v504 = vmax.f32 %v444, 0.0
    %v505 = vmax.f32 %v449, 0.0
    %v506 = vmax.f32 %v452, 0.0
    %v507 = vmax.f32 %v457, 0.0
    %v508 = vmax.f32 %v460, 0.0
    %v509 = vmax.f32 %v465, 0.0
    %v510 = vmax.f32 %v468, 0.0
    %v511 = vmax.f32 %v473, 0.0
    %v512 = vmax.f32 %v476, 0.0
    %v513 = vmax.f32 %v481, 0.0
    %v514 = vmax.f32 %v484, 0.0
    %v515 = vmax.f32 %v489, 0.0
    %v516 = vmax.f32 %v492, 0.0
    %v517 = vmax.f32 %v497, 0.0
    %v518 = vmax.f32 %v500, 0.0
    %v519 = vpack.c.bf16 %v504, %v503
    %v520 = vpack.c.bf16 %v506, %v505
    %v521 = vpack.c.bf16 %v508, %v507
    %v522 = vpack.c.bf16 %v510, %v509
    %v523 = vpack.c.bf16 %v512, %v511
    %v524 = vpack.c.bf16 %v514, %v513
    %v525 = vpack.c.bf16 %v516, %v515
    %v526 = vpack.c.bf16 %v518, %v517
    %v527 = vld [vmem:[#allocation8] sm:$0xf]
    %v528 = vld [vmem:[#allocation8 + $0x4] sm:$0xf]
    %v529 = vld [vmem:[#allocation8 + $0x8] sm:$0xf]
    %v530 = vld [vmem:[#allocation8 + $0xc] sm:$0xf]
    %v531 = vld [vmem:[#allocation8 + $0x10] sm:$0xf]
    %v532 = vld [vmem:[#allocation8 + $0x14] sm:$0xf]
    %v533 = vld [vmem:[#allocation8 + $0x18] sm:$0xf]
    %v534 = vld [vmem:[#allocation8 + $0x1c] sm:$0xf]
    %v535 = vld [vmem:[#allocation8 + $0x20] sm:$0xf]
    %v536 = vld [vmem:[#allocation8 + $0x24] sm:$0xf]
    %v537 = vld [vmem:[#allocation8 + $0x28] sm:$0xf]
    %v538 = vld [vmem:[#allocation8 + $0x2c] sm:$0xf]
    %v539 = vld [vmem:[#allocation8 + $0x30] sm:$0xf]
    %v540 = vld [vmem:[#allocation8 + $0x34] sm:$0xf]
    %v541 = vld [vmem:[#allocation8 + $0x38] sm:$0xf]
    %v542 = vld [vmem:[#allocation8 + $0x3c] sm:$0xf]
    %v559 = vunpack.c.l.b16 %v527
    %v560 = vunpack.c.l.b16 %v528
    %v561 = vunpack.c.l.b16 %v529
    %v562 = vunpack.c.l.b16 %v530
    %v563 = vunpack.c.l.b16 %v531
    %v564 = vunpack.c.l.b16 %v532
    %v565 = vunpack.c.l.b16 %v533
    %v566 = vunpack.c.l.b16 %v534
    %v567 = vunpack.c.l.b16 %v535
    %v568 = vunpack.c.l.b16 %v536
    %v569 = vunpack.c.l.b16 %v537
    %v570 = vunpack.c.l.b16 %v538
    %v571 = vunpack.c.l.b16 %v539
    %v572 = vunpack.c.l.b16 %v540
    %v573 = vunpack.c.l.b16 %v541
    %v574 = vunpack.c.l.b16 %v542
    %v575 = vpack.c.b16 %v560, %v559
    %v576 = vpack.c.b16 %v562, %v561
    %v577 = vpack.c.b16 %v564, %v563
    %v578 = vpack.c.b16 %v566, %v565
    %v579 = vpack.c.b16 %v568, %v567
    %v580 = vpack.c.b16 %v570, %v569
    %v581 = vpack.c.b16 %v572, %v571
    %v582 = vpack.c.b16 %v574, %v573
    %591 = vmatprep.subr.bf16.mxu0 0
    %592 = vmatpush1.bf16.msra.mxu0 %v582
    %593 = vmatprep.subr.bf16.mxu0 0
    %594 = vmatpush1.bf16.msra.mxu0 %v581
    %595 = vmatprep.subr.bf16.mxu0 0
    %596 = vmatpush1.bf16.msra.mxu0 %v580
    %597 = vmatprep.subr.bf16.mxu0 0
    %598 = vmatpush1.bf16.msra.mxu0 %v579
    %599 = vmatprep.subr.bf16.mxu0 0
    %600 = vmatpush1.bf16.msra.mxu0 %v578
    %601 = vmatprep.subr.bf16.mxu0 0
    %602 = vmatpush1.bf16.msra.mxu0 %v577
    %603 = vmatprep.subr.bf16.mxu0 0
    %604 = vmatpush1.bf16.msra.mxu0 %v576
    %605 = vmatprep.subr.bf16.mxu0 0
    %606 = vmatpush1.bf16.msra.mxu0 %v575
    %607 = vmatprep.subr.bf16.mxu0 0
    %608 = vmatpush2.bf16.msra.mxu0 0
    %609 = vmatprep.subr.bf16.mxu0 0
    %610 = vmatpush2.bf16.msra.mxu0 0
    %611 = vmatprep.subr.bf16.mxu0 0
    %612 = vmatpush2.bf16.msra.mxu0 0
    %613 = vmatprep.subr.bf16.mxu0 0
    %614 = vmatpush2.bf16.msra.mxu0 0
    %615 = vmatprep.subr.bf16.mxu0 0
    %616 = vmatpush2.bf16.msra.mxu0 0
    %617 = vmatprep.subr.bf16.mxu0 0
    %618 = vmatpush2.bf16.msra.mxu0 0
    %619 = vmatprep.subr.bf16.mxu0 0
    %620 = vmatpush2.bf16.msra.mxu0 0
    %621 = vmatprep.subr.bf16.mxu0 0
    %622 = vmatpush2.bf16.msra.mxu0 0
    %623 = vmatprep.mubr.bf16.mxu0 0
    %624 = vmatmul.mubr.bf16.gmra.mxu0 %v519
    %v625 = vpop.f32.mrf.mxu0
    %v626 = vadd.f32 0.0, %v625
    %v627 = vpop.f32.mrf.mxu0
    %v628 = vpop.f32.mrf.mxu0
    %v629 = vadd.f32 0.0, %v628
    %v630 = vpop.f32.mrf.mxu0
    %631 = vmatprep.mubr.bf16.mxu0 0
    %632 = vmatmul.mubr.bf16.gmra.mxu0 %v520
    %v633 = vpop.f32.mrf.mxu0
    %v634 = vadd.f32 0.0, %v633
    %v635 = vpop.f32.mrf.mxu0
    %v636 = vpop.f32.mrf.mxu0
    %v637 = vadd.f32 0.0, %v636
    %v638 = vpop.f32.mrf.mxu0
    %639 = vmatprep.mubr.bf16.mxu0 0
    %640 = vmatmul.mubr.bf16.gmra.mxu0 %v521
    %v641 = vpop.f32.mrf.mxu0
    %v642 = vadd.f32 0.0, %v641
    %v643 = vpop.f32.mrf.mxu0
    %v644 = vpop.f32.mrf.mxu0
    %v645 = vadd.f32 0.0, %v644
    %v646 = vpop.f32.mrf.mxu0
    %647 = vmatprep.mubr.bf16.mxu0 0
    %648 = vmatmul.mubr.bf16.gmra.mxu0 %v522
    %v649 = vpop.f32.mrf.mxu0
    %v650 = vadd.f32 0.0, %v649
    %v651 = vpop.f32.mrf.mxu0
    %v652 = vpop.f32.mrf.mxu0
    %v653 = vadd.f32 0.0, %v652
    %v654 = vpop.f32.mrf.mxu0
    %655 = vmatprep.mubr.bf16.mxu0 0
    %656 = vmatmul.mubr.bf16.gmra.mxu0 %v523
    %v657 = vpop.f32.mrf.mxu0
    %v658 = vadd.f32 0.0, %v657
    %v659 = vpop.f32.mrf.mxu0
    %v660 = vpop.f32.mrf.mxu0
    %v661 = vadd.f32 0.0, %v660
    %v662 = vpop.f32.mrf.mxu0
    %663 = vmatprep.mubr.bf16.mxu0 0
    %664 = vmatmul.mubr.bf16.gmra.mxu0 %v524
    %v665 = vpop.f32.mrf.mxu0
    %v666 = vadd.f32 0.0, %v665
    %v667 = vpop.f32.mrf.mxu0
    %v668 = vpop.f32.mrf.mxu0
    %v669 = vadd.f32 0.0, %v668
    %v670 = vpop.f32.mrf.mxu0
    %671 = vmatprep.mubr.bf16.mxu0 0
    %672 = vmatmul.mubr.bf16.gmra.mxu0 %v525
    %v673 = vpop.f32.mrf.mxu0
    %v674 = vadd.f32 0.0, %v673
    %v675 = vpop.f32.mrf.mxu0
    %v676 = vpop.f32.mrf.mxu0
    %v677 = vadd.f32 0.0, %v676
    %v678 = vpop.f32.mrf.mxu0
    %679 = vmatprep.mubr.bf16.mxu0 0
    %680 = vmatmul.mubr.bf16.gmra.mxu0 %v526
    %v681 = vpop.f32.mrf.mxu0
    %v682 = vadd.f32 0.0, %v681
    %v683 = vpop.f32.mrf.mxu0
    %v684 = vpop.f32.mrf.mxu0
    %v685 = vadd.f32 0.0, %v684
    %v686 = vpop.f32.mrf.mxu0
    %687 = vdwg.mxu0
    %v688 = vpack.c.bf16 %v629, %v626
    %v689 = vpack.c.bf16 %v637, %v634
    %v690 = vpack.c.bf16 %v645, %v642
    %v691 = vpack.c.bf16 %v653, %v650
    %v692 = vpack.c.bf16 %v661, %v658
    %v693 = vpack.c.bf16 %v669, %v666
    %v694 = vpack.c.bf16 %v677, %v674
    %v695 = vpack.c.bf16 %v685, %v682
    %v696 = vld [vmem:[%s5] sm:$0x1]
    %v698 = vlaneseq
    %v699 = vshrl.u32 %v698, 7
    %v700 = vsub.s32 0, %v699
    %v701 = vrot.slane %v696, %v700
    %703 = vmatprep.subr.bf16.mxu0 0
    %704 = vmatpush1.bf16.msra.mxu0 %v695
    %705 = vmatprep.subr.bf16.mxu0 0
    %706 = vmatpush1.bf16.msra.mxu0 %v694
    %707 = vmatprep.subr.bf16.mxu0 0
    %708 = vmatpush1.bf16.msra.mxu0 %v693
    %709 = vmatprep.subr.bf16.mxu0 0
    %710 = vmatpush1.bf16.msra.mxu0 %v692
    %711 = vmatprep.subr.bf16.mxu0 0
    %712 = vmatpush1.bf16.msra.mxu0 %v691
    %713 = vmatprep.subr.bf16.mxu0 0
    %714 = vmatpush1.bf16.msra.mxu0 %v690
    %715 = vmatprep.subr.bf16.mxu0 0
    %716 = vmatpush1.bf16.msra.mxu0 %v689
    %717 = vmatprep.subr.bf16.mxu0 0
    %718 = vmatpush1.bf16.msra.mxu0 %v688
    %719 = vmatprep.subr.bf16.mxu0 0
    %720 = vmatpush2.bf16.msra.mxu0 0
    %721 = vmatprep.subr.bf16.mxu0 0
    %722 = vmatpush2.bf16.msra.mxu0 0
    %723 = vmatprep.subr.bf16.mxu0 0
    %724 = vmatpush2.bf16.msra.mxu0 0
    %725 = vmatprep.subr.bf16.mxu0 0
    %726 = vmatpush2.bf16.msra.mxu0 0
    %727 = vmatprep.subr.bf16.mxu0 0
    %728 = vmatpush2.bf16.msra.mxu0 0
    %729 = vmatprep.subr.bf16.mxu0 0
    %730 = vmatpush2.bf16.msra.mxu0 0
    %731 = vmatprep.subr.bf16.mxu0 0
    %732 = vmatpush2.bf16.msra.mxu0 0
    %733 = vmatprep.subr.bf16.mxu0 0
    %734 = vmatpush2.bf16.msra.mxu0 0
    %735 = vmatprep.mubr.bf16.mxu0 0
    %736 = vmatmul.mubr.bf16.gmra.mxu0 %v390
    %v737 = vpop.f32.mrf.mxu0
    %v738 = vadd.f32 %v701, %v737
    %v739 = vpop.f32.mrf.mxu0
    %v740 = vpop.f32.mrf.mxu0
    %v741 = vadd.f32 %v701, %v740
    %v742 = vpop.f32.mrf.mxu0
    %743 = vmatprep.mubr.bf16.mxu0 0
    %744 = vmatmul.mubr.bf16.gmra.mxu0 %v391
    %v745 = vpop.f32.mrf.mxu0
    %v746 = vadd.f32 %v701, %v745
    %v747 = vpop.f32.mrf.mxu0
    %v748 = vpop.f32.mrf.mxu0
    %v749 = vadd.f32 %v701, %v748
    %v750 = vpop.f32.mrf.mxu0
    %751 = vmatprep.mubr.bf16.mxu0 0
    %752 = vmatmul.mubr.bf16.gmra.mxu0 %v392
    %v753 = vpop.f32.mrf.mxu0
    %v754 = vadd.f32 %v701, %v753
    %v755 = vpop.f32.mrf.mxu0
    %v756 = vpop.f32.mrf.mxu0
    %v757 = vadd.f32 %v701, %v756
    %v758 = vpop.f32.mrf.mxu0
    %759 = vmatprep.mubr.bf16.mxu0 0
    %760 = vmatmul.mubr.bf16.gmra.mxu0 %v393
    %v761 = vpop.f32.mrf.mxu0
    %v762 = vadd.f32 %v701, %v761
    %v763 = vpop.f32.mrf.mxu0
    %v764 = vpop.f32.mrf.mxu0
    %v765 = vadd.f32 %v701, %v764
    %v766 = vpop.f32.mrf.mxu0
    %767 = vmatprep.mubr.bf16.mxu0 0
    %768 = vmatmul.mubr.bf16.gmra.mxu0 %v394
    %v769 = vpop.f32.mrf.mxu0
    %v770 = vadd.f32 %v701, %v769
    %v771 = vpop.f32.mrf.mxu0
    %v772 = vpop.f32.mrf.mxu0
    %v773 = vadd.f32 %v701, %v772
    %v774 = vpop.f32.mrf.mxu0
    %775 = vmatprep.mubr.bf16.mxu0 0
    %776 = vmatmul.mubr.bf16.gmra.mxu0 %v395
    %v777 = vpop.f32.mrf.mxu0
    %v778 = vadd.f32 %v701, %v777
    %v779 = vpop.f32.mrf.mxu0
    %v780 = vpop.f32.mrf.mxu0
    %v781 = vadd.f32 %v701, %v780
    %v782 = vpop.f32.mrf.mxu0
    %783 = vmatprep.mubr.bf16.mxu0 0
    %784 = vmatmul.mubr.bf16.gmra.mxu0 %v396
    %v785 = vpop.f32.mrf.mxu0
    %v786 = vadd.f32 %v701, %v785
    %v787 = vpop.f32.mrf.mxu0
    %v788 = vpop.f32.mrf.mxu0
    %v789 = vadd.f32 %v701, %v788
    %v790 = vpop.f32.mrf.mxu0
    %791 = vmatprep.mubr.bf16.mxu0 0
    %792 = vmatmul.mubr.bf16.gmra.mxu0 %v397
    %v793 = vpop.f32.mrf.mxu0
    %v794 = vadd.f32 %v701, %v793
    %v795 = vpop.f32.mrf.mxu0
    %v796 = vpop.f32.mrf.mxu0
    %v797 = vadd.f32 %v701, %v796
    %v798 = vpop.f32.mrf.mxu0
    %799 = vdwg.mxu0
    %v800 = vld [vmem:[%s6] sm:$0xf]
    %v801 = vpack.c.bf16 %v741, %v738
    %v802 = vpack.c.bf16 %v749, %v746
    %v803 = vpack.c.bf16 %v757, %v754
    %v804 = vpack.c.bf16 %v765, %v762
    %v805 = vpack.c.bf16 %v773, %v770
    %v806 = vpack.c.bf16 %v781, %v778
    %v807 = vpack.c.bf16 %v789, %v786
    %v808 = vpack.c.bf16 %v797, %v794
    %809 = vmatprep.subr.bf16.mxu0 0
    %810 = vmatpush1.bf16.msra.mxu0 %v808
    %811 = vmatprep.subr.bf16.mxu0 0
    %812 = vmatpush1.bf16.msra.mxu0 %v807
    %813 = vmatprep.subr.bf16.mxu0 0
    %814 = vmatpush1.bf16.msra.mxu0 %v806
    %815 = vmatprep.subr.bf16.mxu0 0
    %816 = vmatpush1.bf16.msra.mxu0 %v805
    %817 = vmatprep.subr.bf16.mxu0 0
    %818 = vmatpush1.bf16.msra.mxu0 %v804
    %819 = vmatprep.subr.bf16.mxu0 0
    %820 = vmatpush1.bf16.msra.mxu0 %v803
    %821 = vmatprep.subr.bf16.mxu0 0
    %822 = vmatpush1.bf16.msra.mxu0 %v802
    %823 = vmatprep.subr.bf16.mxu0 0
    %824 = vmatpush1.bf16.msra.mxu0 %v801
    %825 = vmatprep.subr.bf16.mxu0 0
    %826 = vmatpush2.bf16.msra.mxu0 0
    %827 = vmatprep.subr.bf16.mxu0 0
    %828 = vmatpush2.bf16.msra.mxu0 0
    %829 = vmatprep.subr.bf16.mxu0 0
    %830 = vmatpush2.bf16.msra.mxu0 0
    %831 = vmatprep.subr.bf16.mxu0 0
    %832 = vmatpush2.bf16.msra.mxu0 0
    %833 = vmatprep.subr.bf16.mxu0 0
    %834 = vmatpush2.bf16.msra.mxu0 0
    %835 = vmatprep.subr.bf16.mxu0 0
    %836 = vmatpush2.bf16.msra.mxu0 0
    %837 = vmatprep.subr.bf16.mxu0 0
    %838 = vmatpush2.bf16.msra.mxu0 0
    %839 = vmatprep.subr.bf16.mxu0 0
    %840 = vmatpush2.bf16.msra.mxu0 0
    %841 = vmatprep.mubr.bf16.mxu0 0
    %842 = vmatmul.mubr.bf16.gmra.mxu0 %v800
    %v843 = vpop.f32.mrf.mxu0
    %v844 = vadd.f32 0.0, %v843
    %v845 = vpop.f32.mrf.mxu0
    %v846 = vpop.f32.mrf.mxu0
    %v847 = vpop.f32.mrf.mxu0
    %848 = vdwg.mxu0
    %v849 = vld [vmem:[#allocation10] sm:$0xff]
    %v850 = vld [vmem:[#allocation10 + $0x8] sm:$0xff]
    %v851 = vld [vmem:[#allocation10 + $0x10] sm:$0xff]
    %v852 = vld [vmem:[#allocation10 + $0x18] sm:$0xff]
    %v853 = vld [vmem:[#allocation10 + $0x20] sm:$0xff]
    %v854 = vld [vmem:[#allocation10 + $0x28] sm:$0xff]
    %v855 = vld [vmem:[#allocation10 + $0x30] sm:$0xff]
    %v856 = vld [vmem:[#allocation10 + $0x38] sm:$0xff]
    %v857 = vld [vmem:[#allocation10 + $0x40] sm:$0xff]
    %v858 = vld [vmem:[#allocation10 + $0x48] sm:$0xff]
    %v859 = vld [vmem:[#allocation10 + $0x50] sm:$0xff]
    %v860 = vld [vmem:[#allocation10 + $0x58] sm:$0xff]
    %v861 = vld [vmem:[#allocation10 + $0x60] sm:$0xff]
    %v862 = vld [vmem:[#allocation10 + $0x68] sm:$0xff]
    %v863 = vld [vmem:[#allocation10 + $0x70] sm:$0xff]
    %v864 = vld [vmem:[#allocation10 + $0x78] sm:$0xff]
    %v865 = vld [vmem:[%s8] sm:$0x1]
    %v867 = vlaneseq
    %v868 = vshrl.u32 %v867, 7
    %v869 = vsub.s32 0, %v868
    %v870 = vrot.slane %v865, %v869
    %872 = vmatprep.subr.mxu0 0.0
    %873 = vmatpush1.msra.mxu0 %v864
    %874 = vmatprep.subr.mxu0 0.0
    %875 = vmatpush1.msra.mxu0 %v863
    %876 = vmatprep.subr.mxu0 0.0
    %877 = vmatpush1.msra.mxu0 %v862
    %878 = vmatprep.subr.mxu0 0.0
    %879 = vmatpush1.msra.mxu0 %v861
    %880 = vmatprep.subr.mxu0 0.0
    %881 = vmatpush1.msra.mxu0 %v860
    %882 = vmatprep.subr.mxu0 0.0
    %883 = vmatpush1.msra.mxu0 %v859
    %884 = vmatprep.subr.mxu0 0.0
    %885 = vmatpush1.msra.mxu0 %v858
    %886 = vmatprep.subr.mxu0 0.0
    %887 = vmatpush1.msra.mxu0 %v857
    %888 = vmatprep.subr.mxu0 0.0
    %889 = vmatpush1.msra.mxu0 %v856
    %890 = vmatprep.subr.mxu0 0.0
    %891 = vmatpush1.msra.mxu0 %v855
    %892 = vmatprep.subr.mxu0 0.0
    %893 = vmatpush1.msra.mxu0 %v854
    %894 = vmatprep.subr.mxu0 0.0
    %895 = vmatpush1.msra.mxu0 %v853
    %896 = vmatprep.subr.mxu0 0.0
    %897 = vmatpush1.msra.mxu0 %v852
    %898 = vmatprep.subr.mxu0 0.0
    %899 = vmatpush1.msra.mxu0 %v851
    %900 = vmatprep.subr.mxu0 0.0
    %901 = vmatpush1.msra.mxu0 %v850
    %902 = vmatprep.subr.mxu0 0.0
    %903 = vmatpush1.msra.mxu0 %v849
    %904 = vmatprep.subr.mxu0 0.0
    %905 = vmatpush2.msra.mxu0 0.0
    %906 = vmatprep.subr.mxu0 0.0
    %907 = vmatpush2.msra.mxu0 0.0
    %908 = vmatprep.subr.mxu0 0.0
    %909 = vmatpush2.msra.mxu0 0.0
    %910 = vmatprep.subr.mxu0 0.0
    %911 = vmatpush2.msra.mxu0 0.0
    %912 = vmatprep.subr.mxu0 0.0
    %913 = vmatpush2.msra.mxu0 0.0
    %914 = vmatprep.subr.mxu0 0.0
    %915 = vmatpush2.msra.mxu0 0.0
    %916 = vmatprep.subr.mxu0 0.0
    %917 = vmatpush2.msra.mxu0 0.0
    %918 = vmatprep.subr.mxu0 0.0
    %919 = vmatpush2.msra.mxu0 0.0
    %920 = vmatprep.subr.mxu0 0.0
    %921 = vmatpush2.msra.mxu0 0.0
    %922 = vmatprep.subr.mxu0 0.0
    %923 = vmatpush2.msra.mxu0 0.0
    %924 = vmatprep.subr.mxu0 0.0
    %925 = vmatpush2.msra.mxu0 0.0
    %926 = vmatprep.subr.mxu0 0.0
    %927 = vmatpush2.msra.mxu0 0.0
    %928 = vmatprep.subr.mxu0 0.0
    %929 = vmatpush2.msra.mxu0 0.0
    %930 = vmatprep.subr.mxu0 0.0
    %931 = vmatpush2.msra.mxu0 0.0
    %932 = vmatprep.subr.mxu0 0.0
    %933 = vmatpush2.msra.mxu0 0.0
    %934 = vmatprep.subr.mxu0 0.0
    %935 = vmatpush2.msra.mxu0 0.0
    %936 = vmatprep.mubr.f32.mxu0 0.0
    %937 = vmatmul.mubr.f32.gmra.mxu0 %v844
    %v938 = vpop.f32.mrf.mxu0
    %v939 = vadd.f32 %v870, %v938
    %v940 = vpop.f32.mrf.mxu0
    %941 = vdwg.mxu0
    %942 = vst [vmem:[#allocation11] sm:$0xff] %v939
    // Predicated region
    $region58: #{tpu_custom_call.1} parent=1 // pred_check
      _
    $region59: #{tpu_custom_call.1} parent=1 // pred_check_branch
      %944 = sbr.rel (0) target = $region61
    $region60: #{tpu_custom_call.1} parent=1 // pred_region
      %s946 = ssub.s32 128, 128
      %947 = vsyncadd [#allocation4], %s946
      %s949 = sshll.u32 [#allocation11], 4
      %s950 = int_to_ptr.vmem [resolvable:$true] %s949
      %952 = dma.vmem_to_hbm [thread:$0]  %s950, 128, %s9, [#allocation4]
    $region61: #{tpu_custom_call.1} parent=1 // pred_fallthru
      _
    // Predicated region
    $region62: #{tpu_custom_call.1} parent=1 // pred_check
      _
    $region63: #{tpu_custom_call.1} parent=1 // pred_check_branch
      %954 = sbr.rel (0) target = $region65
    $region64: #{tpu_custom_call.1} parent=1 // pred_region
      %955 = dma.done [#allocation4], 128
    $region65: #{tpu_custom_call.1} parent=1 // pred_fallthru
      _
    %956 = vsyncpa [#allocation3], 1
    %957 = vsyncpa [#allocation6], 1
    %958 = vsyncpa [#allocation9], 1
    %959 = vsyncpa [#allocation4], 1

</llo_original>
